<compile_context>
chip_gen: v5e
topology: v5e:2x2
jax: 0.10.0
libtpu: 0.0.40
codegen_flags: <defaults>
</compile_context>

<pallas_src>
import functools

import jax
import jax.numpy as jnp
from jax.experimental import pallas as pl
from jax.experimental.pallas import tpu as pltpu


def _se_kernel(x_ref, w1t_ref, b1_ref, w2_ref, b2_ref, o_ref):
    # x_ref / o_ref : (C, HW)      -- HW on the lane axis (lane dense)
    # w1t_ref       : (C, Cmid)    -- fc1 weight, transposed
    # b1_ref        : (1, Cmid)
    # w2_ref        : (C, Cmid)    -- fc2 weight
    # b2_ref        : (C, 1)
    xb = x_ref[...]
    xf = xb.astype(jnp.float32)

    # ---- squeeze: global average pool over the spatial (lane) axis ----
    inv_hw = 1.0 / xf.shape[-1]
    s = jnp.sum(xf, axis=-1, keepdims=True) * inv_hw            # (C, 1)

    # ---- fc1 (1x1 conv) + ReLU: z[m] = sum_c W1[m,c] * s[c] + b1[m] ----
    z = jnp.sum(w1t_ref[...] * s, axis=0, keepdims=True) + b1_ref[...]   # (1, Cmid)
    z = jnp.maximum(z, 0.0)

    # ---- fc2 (1x1 conv) + sigmoid: e[c] = sum_m W2[c,m] * z[m] + b2[c] ----
    e = jnp.sum(w2_ref[...] * z, axis=-1, keepdims=True) + b2_ref[...]   # (C, 1)
    gate = 1.0 / (1.0 + jnp.exp(-e))                            # sigmoid, (C, 1)

    # ---- excite: broadcast the per-channel gate over the spatial lanes ----
    o_ref[...] = (xf * gate).astype(o_ref.dtype)


@jax.jit
def se_forward(x, fc1_w, fc1_b, fc2_w, fc2_b):
    """SE forward.

    x:      (N, C, H, W)
    fc1_w:  (Cmid, C, 1, 1), fc1_b: (Cmid,)
    fc2_w:  (C, Cmid, 1, 1), fc2_b: (C,)
    returns (N, C, H, W) = x * sigmoid(fc2(relu(fc1(avgpool(x)))))
    """
    N, C, H, W = x.shape
    Cmid = fc1_w.shape[0]
    HW = H * W

    # Free, layout-preserving reshapes / tiny weight reshapes (no big transposes).
    x3 = x.reshape(N, C, HW)
    w1t = fc1_w.reshape(Cmid, C).T.astype(jnp.float32)          # (C, Cmid)
    b1r = fc1_b.reshape(1, Cmid).astype(jnp.float32)
    w2 = fc2_w.reshape(C, Cmid).astype(jnp.float32)             # (C, Cmid)
    b2c = fc2_b.reshape(C, 1).astype(jnp.float32)

    out3 = pl.pallas_call(
        _se_kernel,
        out_shape=jax.ShapeDtypeStruct((N, C, HW), x.dtype),
        grid_spec=pltpu.PrefetchScalarGridSpec(
            num_scalar_prefetch=0,
            grid=(N,),
            in_specs=[
                # Whole (C, HW) image tile per grid step; block == full trailing dims.
                pl.BlockSpec((None, C, HW), lambda n: (n, 0, 0)),
                # Grid-invariant weights/biases: constant index_map -> stay resident.
                pl.BlockSpec((C, Cmid), lambda n: (0, 0)),
                pl.BlockSpec((1, Cmid), lambda n: (0, 0)),
                pl.BlockSpec((C, Cmid), lambda n: (0, 0)),
                pl.BlockSpec((C, 1), lambda n: (0, 0)),
            ],
            out_specs=pl.BlockSpec((None, C, HW), lambda n: (n, 0, 0)),
        ),
        compiler_params=pltpu.CompilerParams(
            dimension_semantics=("parallel",)),  # lets v7x megacore shard over N
    )(x3, w1t, b1r, w2, b2c)

    return out3.reshape(N, C, H, W)


def _reference(x, fc1_w, fc1_b, fc2_w, fc2_b):
    s = jnp.mean(x, axis=(2, 3), keepdims=True)                 # adaptive avg pool -> 1x1
    z = jax.lax.conv_general_dilated(
        s, fc1_w, window_strides=(1, 1), padding="VALID",
        dimension_numbers=("NCHW", "OIHW", "NCHW")) + fc1_b.reshape(1, -1, 1, 1)
    z = jnp.maximum(z, 0.0)
    e = jax.lax.conv_general_dilated(
        z, fc2_w, window_strides=(1, 1), padding="VALID",
        dimension_numbers=("NCHW", "OIHW", "NCHW")) + fc2_b.reshape(1, -1, 1, 1)
    g = jax.nn.sigmoid(e)
    return x * g


if __name__ == "__main__":
    key = jax.random.PRNGKey(0)
    kx, kw1, kb1, kw2, kb2 = jax.random.split(key, 5)

    # Small shapes consistent with the module (SE over an NCHW feature map).
    N, C, H, W = 2, 16, 16, 16
    reduction = 1
    Cmid = C // reduction

    x = jax.random.normal(kx, (N, C, H, W), dtype=jnp.float32)
    fc1_w = jax.random.normal(kw1, (Cmid, C, 1, 1), dtype=jnp.float32) * 0.1
    fc1_b = jax.random.normal(kb1, (Cmid,), dtype=jnp.float32) * 0.1
    fc2_w = jax.random.normal(kw2, (C, Cmid, 1, 1), dtype=jnp.float32) * 0.1
    fc2_b = jax.random.normal(kb2, (C,), dtype=jnp.float32) * 0.1

    out = se_forward(x, fc1_w, fc1_b, fc2_w, fc2_b)
    out = jax.block_until_ready(out)

    ref = _reference(x, fc1_w, fc1_b, fc2_w, fc2_b)
    assert out.shape == ref.shape == (N, C, H, W)
    assert jnp.allclose(out, ref, atol=1e-4, rtol=1e-4)

    print("KERNEL_OK")
</pallas_src>

<mosaic_0001>
module attributes {stable_mosaic.version = 11 : i64} {
  func.func @_se_kernel(%arg0: i32, %arg1: memref<1x16x256xf32, #tpu.memory_space<vmem>>, %arg2: memref<16x16xf32, #tpu.memory_space<vmem>>, %arg3: memref<1x16xf32, #tpu.memory_space<vmem>>, %arg4: memref<16x16xf32, #tpu.memory_space<vmem>>, %arg5: memref<16x1xf32, #tpu.memory_space<vmem>>, %arg6: memref<1x16x256xf32, #tpu.memory_space<vmem>>) attributes {dimension_semantics = [#tpu.dimension_semantics<parallel>], iteration_bounds = array<i64: 2>, scalar_prefetch = 0 : i64, scratch_operands = 0 : i64, tpu.core_type = #tpu.core_type<tc>, window_params = [{transform_indices = @transform_0, window_bounds = array<i64: 1, 16, 256>}, {pipeline_mode = #tpu.pipeline_mode<synchronous>, transform_indices = @transform_1, window_bounds = array<i64: 16, 16>}, {pipeline_mode = #tpu.pipeline_mode<synchronous>, transform_indices = @transform_2, window_bounds = array<i64: 1, 16>}, {pipeline_mode = #tpu.pipeline_mode<synchronous>, transform_indices = @transform_3, window_bounds = array<i64: 16, 16>}, {pipeline_mode = #tpu.pipeline_mode<synchronous>, transform_indices = @transform_4, window_bounds = array<i64: 16, 1>}, {transform_indices = @transform_5, window_bounds = array<i64: 1, 16, 256>}]} {
    %c0 = arith.constant 0 : index
    %c0_0 = arith.constant 0 : index
    %c0_1 = arith.constant 0 : index
    %0 = vector.load %arg1[%c0, %c0_0, %c0_1] : memref<1x16x256xf32, #tpu.memory_space<vmem>>, vector<1x16x256xf32>
    %1 = vector.shape_cast %0 : vector<1x16x256xf32> to vector<16x256xf32>
    %cst = arith.constant dense<0.000000e+00> : vector<16xf32>
    %2 = vector.multi_reduction <add>, %1, %cst [1] : vector<16x256xf32> to vector<16xf32>
    %3 = vector.shape_cast %2 : vector<16xf32> to vector<16x1xf32>
    %cst_2 = arith.constant 3.906250e-03 : f32
    %4 = vector.broadcast %cst_2 : f32 to vector<16x1xf32>
    %5 = arith.mulf %3, %4 : vector<16x1xf32>
    %c0_3 = arith.constant 0 : index
    %c0_4 = arith.constant 0 : index
    %6 = vector.load %arg2[%c0_3, %c0_4] : memref<16x16xf32, #tpu.memory_space<vmem>>, vector<16x16xf32>
    %7 = vector.broadcast %5 : vector<16x1xf32> to vector<16x16xf32>
    %8 = arith.mulf %6, %7 : vector<16x16xf32>
    %cst_5 = arith.constant dense<0.000000e+00> : vector<16xf32>
    %9 = vector.multi_reduction <add>, %8, %cst_5 [0] : vector<16x16xf32> to vector<16xf32>
    %10 = vector.shape_cast %9 : vector<16xf32> to vector<1x16xf32>
    %c0_6 = arith.constant 0 : index
    %c0_7 = arith.constant 0 : index
    %11 = vector.load %arg3[%c0_6, %c0_7] : memref<1x16xf32, #tpu.memory_space<vmem>>, vector<1x16xf32>
    %12 = arith.addf %10, %11 : vector<1x16xf32>
    %cst_8 = arith.constant 0.000000e+00 : f32
    %13 = vector.broadcast %cst_8 : f32 to vector<1x16xf32>
    %14 = arith.maximumf %12, %13 : vector<1x16xf32>
    %c0_9 = arith.constant 0 : index
    %c0_10 = arith.constant 0 : index
    %15 = vector.load %arg4[%c0_9, %c0_10] : memref<16x16xf32, #tpu.memory_space<vmem>>, vector<16x16xf32>
    %16 = vector.broadcast %14 : vector<1x16xf32> to vector<16x16xf32>
    %17 = arith.mulf %15, %16 : vector<16x16xf32>
    %cst_11 = arith.constant dense<0.000000e+00> : vector<16xf32>
    %18 = vector.multi_reduction <add>, %17, %cst_11 [1] : vector<16x16xf32> to vector<16xf32>
    %19 = vector.shape_cast %18 : vector<16xf32> to vector<16x1xf32>
    %c0_12 = arith.constant 0 : index
    %c0_13 = arith.constant 0 : index
    %20 = vector.load %arg5[%c0_12, %c0_13] : memref<16x1xf32, #tpu.memory_space<vmem>>, vector<16x1xf32>
    %21 = arith.addf %19, %20 : vector<16x1xf32>
    %cst_14 = arith.constant 0.000000e+00 : f32
    %22 = vector.broadcast %cst_14 : f32 to vector<16x1xf32>
    %23 = arith.subf %22, %21 : vector<16x1xf32>
    %24 = math.exp %23 : vector<16x1xf32>
    %cst_15 = arith.constant 1.000000e+00 : f32
    %25 = vector.broadcast %cst_15 : f32 to vector<16x1xf32>
    %26 = arith.addf %25, %24 : vector<16x1xf32>
    %cst_16 = arith.constant 1.000000e+00 : f32
    %27 = vector.broadcast %cst_16 : f32 to vector<16x1xf32>
    %28 = arith.divf %27, %26 : vector<16x1xf32>
    %29 = vector.broadcast %28 : vector<16x1xf32> to vector<16x256xf32>
    %30 = arith.mulf %1, %29 : vector<16x256xf32>
    %c0_17 = arith.constant 0 : index
    %c0_18 = arith.constant 0 : index
    %c0_19 = arith.constant 0 : index
    %31 = vector.load %arg6[%c0_17, %c0_18, %c0_19] : memref<1x16x256xf32, #tpu.memory_space<vmem>>, vector<1x16x256xf32>
    %32 = vector.shape_cast %31 : vector<1x16x256xf32> to vector<16x256xf32>
    %33 = vector.shape_cast %30 : vector<16x256xf32> to vector<1x16x256xf32>
    tpu.vector_store %arg6[%c0_17, %c0_18, %c0_19], %33 {strides = array<i32>} : memref<1x16x256xf32, #tpu.memory_space<vmem>>, vector<1x16x256xf32>,
    return
  }
  func.func @transform_0(%arg0: i32) -> (i32, i32, i32) {
    %c0_i32 = arith.constant 0 : i32
    %c0_i32_0 = arith.constant 0 : i32
    %c0_i32_1 = arith.constant 0 : i32
    return %arg0, %c0_i32, %c0_i32_0 : i32, i32, i32
  }
  func.func @transform_1(%arg0: i32) -> (i32, i32) {
    %c0_i32 = arith.constant 0 : i32
    %c0_i32_0 = arith.constant 0 : i32
    %c0_i32_1 = arith.constant 0 : i32
    return %c0_i32, %c0_i32_0 : i32, i32
  }
  func.func @transform_2(%arg0: i32) -> (i32, i32) {
    %c0_i32 = arith.constant 0 : i32
    %c0_i32_0 = arith.constant 0 : i32
    %c0_i32_1 = arith.constant 0 : i32
    return %c0_i32, %c0_i32_0 : i32, i32
  }
  func.func @transform_3(%arg0: i32) -> (i32, i32) {
    %c0_i32 = arith.constant 0 : i32
    %c0_i32_0 = arith.constant 0 : i32
    %c0_i32_1 = arith.constant 0 : i32
    return %c0_i32, %c0_i32_0 : i32, i32
  }
  func.func @transform_4(%arg0: i32) -> (i32, i32) {
    %c0_i32 = arith.constant 0 : i32
    %c0_i32_0 = arith.constant 0 : i32
    %c0_i32_1 = arith.constant 0 : i32
    return %c0_i32, %c0_i32_0 : i32, i32
  }
  func.func @transform_5(%arg0: i32) -> (i32, i32, i32) {
    %c0_i32 = arith.constant 0 : i32
    %c0_i32_0 = arith.constant 0 : i32
    %c0_i32_1 = arith.constant 0 : i32
    return %arg0, %c0_i32, %c0_i32_0 : i32, i32, i32
  }
}

</mosaic_0001>

<llo_original>
// kernel: se_forward.1
$region0: #{se_forward.1}
  #allocation0 [shape = 'u32[]', space=smem, size = 0x4, offset = 0x4, fixed_abs, tag = 'smem constant byte address 0x4 - core index']
  #allocation1 [shape = 'u32[72,128]{1,0:T(1,128)}', space=vmem, size = 0x9000, scoped, tag = 'internal scratch']
  %s0 = inlined_call_operand.vmem [shape: f32[2,16,256], index: 0, kind: input, shape index: {}]
  %s1 = inlined_call_operand.vmem [shape: f32[16,16], index: 1, kind: input, shape index: {}]
  %s2 = inlined_call_operand.vmem [shape: f32[1,16], index: 2, kind: input, shape index: {}]
  %s3 = inlined_call_operand.vmem [shape: f32[16,16], index: 3, kind: input, shape index: {}]
  %s4 = inlined_call_operand.vmem [shape: f32[16,1], index: 4, kind: input, shape index: {}]
  %s5 = inlined_call_operand.vmem [shape: f32[2,16,256], index: 5, kind: output, shape index: {}]
  %s6 = sld [smem:[#allocation0]]
  $region53: #{se_forward.1} parent=0
    _
  %s8 = ssub.s32 1, %s6
  %s9 = scalar_select 0, %s8, %s6
  loop: start=0, step=1, limit=4
  $region2: #{se_forward.1} parent=0 // loop_pre_header
    _
  $region3: #{se_forward.1} parent=0 // loop_header
    %s11 = sphi 0, %s15
    %p12 = scmp.ge.s32.totalorder %s11, 4
    %s21 = sphi 0, %s23
    %s24 = sphi 0, %s21
    %s25 = sphi 0, %s24
    %s41 = sphi 0, %s25
    %s45 = sphi 0, %s45
    %s47 = sphi 0, %s45
    %s48 = sphi 0, %s47
    %s62 = sphi 0, %s48
    %s66 = sphi 0, %s66
    %s68 = sphi 0, %s66
    %s69 = sphi 0, %s68
    %s83 = sphi 0, %s69
    %s87 = sphi 0, %s87
    %s89 = sphi 0, %s87
    %s90 = sphi 0, %s89
    %s104 = sphi 0, %s90
    %s108 = sphi 0, %s108
    %s110 = sphi 0, %s108
    %s111 = sphi 0, %s110
    %s125 = sphi 0, %s111
    %s131 = sphi 0, %s133
    %s134 = sphi 0, %s131
    %s135 = sphi 0, %s134
    %s151 = sphi 0, %s135
  $region4: #{se_forward.1} parent=0 // loop_header_branch
    %14 = sbr.rel (%p12) target = $region8
  $region5: #{se_forward.1} parent=0 // loop_body
    %s16 = ssub.s32 %s11, 1
    %s17 = ssub.s32 %s11, 2
    %s18 = sadd.s32 %s11, 1
    %s19 = ssub.s32 %s11, %s18
    %p20 = scmp.eq.s32.totalorder %s19, 0
    %s22 = sadd.s32 %s21, 1
    %s23 = scalar_select %p20, %s21, %s22
    %p26 = pneg %p20
    %p27 = scmp.eq.s32.totalorder %s11, 1
    %p28 = por %p26, %p27
    %p29 = scmp.ne.s32.totalorder %s21, %s24
    %p30 = scmp.eq.s32.totalorder %s11, 0
    %p31 = por %p29, %p30
    %p32 = scmp.ne.s32.totalorder %s21, %s24
    %p33 = scmp.eq.s32.totalorder %s16, 1
    %p34 = por %p32, %p33
    %p35 = scmp.ne.s32.totalorder %s24, %s25
    %p36 = scmp.eq.s32.totalorder %s16, 0
    %p37 = por %p35, %p36
    %p38 = scmp.ne.s32.totalorder %s24, %s25
    %p39 = scmp.eq.s32.totalorder %s17, 1
    %p40 = por %p38, %p39
    %p42 = scmp.ne.s32.totalorder %s25, %s41
    %p43 = scmp.eq.s32.totalorder %s17, 0
    %p44 = por %p42, %p43
    %s46 = sadd.s32 %s45, 1
    %p49 = scmp.eq.s32.totalorder %s11, 1
    %p50 = scmp.ne.s32.totalorder %s45, %s47
    %p51 = scmp.eq.s32.totalorder %s11, 0
    %p52 = por %p50, %p51
    %p53 = scmp.ne.s32.totalorder %s45, %s47
    %p54 = scmp.eq.s32.totalorder %s16, 1
    %p55 = por %p53, %p54
    %p56 = scmp.ne.s32.totalorder %s47, %s48
    %p57 = scmp.eq.s32.totalorder %s16, 0
    %p58 = por %p56, %p57
    %p59 = scmp.ne.s32.totalorder %s47, %s48
    %p60 = scmp.eq.s32.totalorder %s17, 1
    %p61 = por %p59, %p60
    %p63 = scmp.ne.s32.totalorder %s48, %s62
    %p64 = scmp.eq.s32.totalorder %s17, 0
    %p65 = por %p63, %p64
    %s67 = sadd.s32 %s66, 1
    %p70 = scmp.eq.s32.totalorder %s11, 1
    %p71 = scmp.ne.s32.totalorder %s66, %s68
    %p72 = scmp.eq.s32.totalorder %s11, 0
    %p73 = por %p71, %p72
    %p74 = scmp.ne.s32.totalorder %s66, %s68
    %p75 = scmp.eq.s32.totalorder %s16, 1
    %p76 = por %p74, %p75
    %p77 = scmp.ne.s32.totalorder %s68, %s69
    %p78 = scmp.eq.s32.totalorder %s16, 0
    %p79 = por %p77, %p78
    %p80 = scmp.ne.s32.totalorder %s68, %s69
    %p81 = scmp.eq.s32.totalorder %s17, 1
    %p82 = por %p80, %p81
    %p84 = scmp.ne.s32.totalorder %s69, %s83
    %p85 = scmp.eq.s32.totalorder %s17, 0
    %p86 = por %p84, %p85
    %s88 = sadd.s32 %s87, 1
    %p91 = scmp.eq.s32.totalorder %s11, 1
    %p92 = scmp.ne.s32.totalorder %s87, %s89
    %p93 = scmp.eq.s32.totalorder %s11, 0
    %p94 = por %p92, %p93
    %p95 = scmp.ne.s32.totalorder %s87, %s89
    %p96 = scmp.eq.s32.totalorder %s16, 1
    %p97 = por %p95, %p96
    %p98 = scmp.ne.s32.totalorder %s89, %s90
    %p99 = scmp.eq.s32.totalorder %s16, 0
    %p100 = por %p98, %p99
    %p101 = scmp.ne.s32.totalorder %s89, %s90
    %p102 = scmp.eq.s32.totalorder %s17, 1
    %p103 = por %p101, %p102
    %p105 = scmp.ne.s32.totalorder %s90, %s104
    %p106 = scmp.eq.s32.totalorder %s17, 0
    %p107 = por %p105, %p106
    %s109 = sadd.s32 %s108, 1
    %p112 = scmp.eq.s32.totalorder %s11, 1
    %p113 = scmp.ne.s32.totalorder %s108, %s110
    %p114 = scmp.eq.s32.totalorder %s11, 0
    %p115 = por %p113, %p114
    %p116 = scmp.ne.s32.totalorder %s108, %s110
    %p117 = scmp.eq.s32.totalorder %s16, 1
    %p118 = por %p116, %p117
    %p119 = scmp.ne.s32.totalorder %s110, %s111
    %p120 = scmp.eq.s32.totalorder %s16, 0
    %p121 = por %p119, %p120
    %p122 = scmp.ne.s32.totalorder %s110, %s111
    %p123 = scmp.eq.s32.totalorder %s17, 1
    %p124 = por %p122, %p123
    %p126 = scmp.ne.s32.totalorder %s111, %s125
    %p127 = scmp.eq.s32.totalorder %s17, 0
    %p128 = por %p126, %p127
    %s129 = ssub.s32 %s11, %s18
    %p130 = scmp.eq.s32.totalorder %s129, 0
    %s132 = sadd.s32 %s131, 1
    %s133 = scalar_select %p130, %s131, %s132
    %p136 = pneg %p130
    %p137 = scmp.eq.s32.totalorder %s11, 1
    %p138 = por %p136, %p137
    %p139 = scmp.ne.s32.totalorder %s131, %s134
    %p140 = scmp.eq.s32.totalorder %s11, 0
    %p141 = por %p139, %p140
    %p142 = scmp.ne.s32.totalorder %s131, %s134
    %p143 = scmp.eq.s32.totalorder %s16, 1
    %p144 = por %p142, %p143
    %p145 = scmp.ne.s32.totalorder %s134, %s135
    %p146 = scmp.eq.s32.totalorder %s16, 0
    %p147 = por %p145, %p146
    %p148 = scmp.ne.s32.totalorder %s134, %s135
    %p149 = scmp.eq.s32.totalorder %s17, 1
    %p150 = por %p148, %p149
    %p152 = scmp.ne.s32.totalorder %s135, %s151
    %p153 = scmp.eq.s32.totalorder %s17, 0
    %p154 = por %p152, %p153
    %p155 = scmp.le.s32.totalorder 1, %s11
    %p156 = scmp.lt.s32.totalorder %s11, 3
    %p157 = pnand %p155, %p156
    %p158 = pneg %p157
    // Predicated region
    $region9: #{se_forward.1} parent=5 // pred_check
      _
    $region10: #{se_forward.1} parent=5 // pred_check_branch
      %160 = sbr.rel (%p157) target = $region12
    $region11: #{se_forward.1} parent=5 // pred_region
      %s161 = ssub.s32 %s11, 1
      // Predicated region
      $region13: #{se_forward.1} parent=11 // pred_check
        %p162 = pneg %p58
      $region14: #{se_forward.1} parent=11 // pred_check_branch
        %164 = sbr.rel (%p162) target = $region16
      $region15: #{se_forward.1} parent=11 // pred_region
        _
      $region16: #{se_forward.1} parent=11 // pred_fallthru
        _
      // Predicated region
      $region17: #{se_forward.1} parent=11 // pred_check
        %p165 = pneg %p79
      $region18: #{se_forward.1} parent=11 // pred_check_branch
        %167 = sbr.rel (%p165) target = $region20
      $region19: #{se_forward.1} parent=11 // pred_region
        _
      $region20: #{se_forward.1} parent=11 // pred_fallthru
        _
      // Predicated region
      $region21: #{se_forward.1} parent=11 // pred_check
        %p168 = pneg %p100
      $region22: #{se_forward.1} parent=11 // pred_check_branch
        %170 = sbr.rel (%p168) target = $region24
      $region23: #{se_forward.1} parent=11 // pred_region
        _
      $region24: #{se_forward.1} parent=11 // pred_fallthru
        _
      // Predicated region
      $region25: #{se_forward.1} parent=11 // pred_check
        %p171 = pneg %p121
      $region26: #{se_forward.1} parent=11 // pred_check_branch
        %173 = sbr.rel (%p171) target = $region28
      $region27: #{se_forward.1} parent=11 // pred_region
        _
      $region28: #{se_forward.1} parent=11 // pred_fallthru
        _
    $region12: #{se_forward.1} parent=5 // pred_fallthru
      _
    %p174 = scmp.lt.s32.totalorder %s11, 2
    // Predicated region
    $region29: #{se_forward.1} parent=5 // pred_check
      %p175 = pneg %p174
    $region30: #{se_forward.1} parent=5 // pred_check_branch
      %177 = sbr.rel (%p175) target = $region32
    $region31: #{se_forward.1} parent=5 // pred_region
      // Predicated region
      $region33: #{se_forward.1} parent=31 // pred_check
        %p178 = pneg %p31
      $region34: #{se_forward.1} parent=31 // pred_check_branch
        %180 = sbr.rel (%p178) target = $region36
      $region35: #{se_forward.1} parent=31 // pred_region
        %p181 = scmp.lt.s32.totalorder %s11, 1
        %s182 = scalar_select %p181, %s11, 1
        %s183 = smul.addr %s182, 4
        %s184 = smul.addr %s183, 8
        %s185 = scalar_lea.vmem %s0, %s184
      $region36: #{se_forward.1} parent=31 // pred_fallthru
        _
    $region32: #{se_forward.1} parent=5 // pred_fallthru
      _
    %p186 = scmp.le.s32.totalorder 1, %s11
    %p187 = scmp.lt.s32.totalorder %s11, 3
    %p188 = pnand %p186, %p187
    %p189 = pneg %p188
    // Predicated region
    $region37: #{se_forward.1} parent=5 // pred_check
      _
    $region38: #{se_forward.1} parent=5 // pred_check_branch
      %191 = sbr.rel (%p188) target = $region40
    $region39: #{se_forward.1} parent=5 // pred_region
      %s192 = ssub.s32 %s11, 1
      %p193 = scmp.lt.s32.totalorder %s16, 1
      %s194 = scalar_select %p193, %s16, 1
      %s195 = smul.addr %s194, 4
      %s196 = smul.addr %s195, 8
      %s197 = scalar_lea.vmem %s0, %s196
      %p198 = pneg %p37
      %p199 = pneg %p34
      %p200 = pneg %p58
      %p201 = pneg %p55
      %p202 = pneg %p79
      %p203 = pneg %p76
      %p204 = pneg %p100
      %p205 = pneg %p97
      %p206 = pneg %p121
      %p207 = pneg %p118
      %p208 = pneg %p147
      %p209 = pneg %p144
      %p210 = scmp.lt.s32.totalorder %s16, 1
      %s211 = scalar_select %p210, %s16, 1
      %s212 = smul.addr %s211, 4
      %s213 = smul.addr %s212, 8
      %s214 = scalar_lea.vmem %s5, %s213
      %p215 = scmp.lt.s32.totalorder %s16, 1
      %s216 = scalar_select %p215, %s16, 1
      %s217 = smul.addr %s216, 4
      %s218 = smul.addr %s217, 8
      %s219 = scalar_lea.vmem %s0, %s218
      %p220 = scmp.lt.s32.totalorder %s16, 1
      %s221 = scalar_select %p220, %s16, 1
      %s222 = smul.addr %s221, 4
      %s223 = smul.addr %s222, 8
      %s224 = scalar_lea.vmem %s5, %s223
      %v225 = vld [vmem:[%s219] sm:$0xff]
      %v226 = vld [vmem:[%s219 + $0x8] sm:$0xff]
      %v227 = vld [vmem:[%s219 + $0x10] sm:$0xff]
      %v228 = vld [vmem:[%s219 + $0x18] sm:$0xff]
      %v229 = vadd.f32 %v225, %v226
      %230 = vadd.xlane.f32.xlu0 %v229
      %v231 = vpop.xlane.xlu0 %230
      %v232 = vadd.f32 %v227, %v228
      %233 = vadd.xlane.f32.xlu0 %v232
      %v234 = vpop.xlane.xlu0 %233
      %v235 = vmul.f32 %v231, 0.00390625
      %v236 = vmul.f32 %v234, 0.00390625
      %v237 = vld [vmem:[%s1] sm:$0xff]
      %v238 = vld [vmem:[%s1 + $0x8] sm:$0xff]
      %v239 = vmul.f32 %v237, %v235
      %v240 = vmul.f32 %v238, %v236
      %vm241 = vcmask 130048
      %v242 = vsel %vm241, %v239, 0.0
      %v243 = vsel %vm241, %v240, 0.0
      %v244 = vadd.f32 %v242, %v243
      %v245 = vrot.slane %v244, 4
      %v246 = vadd.f32 %v244, %v245
      %v247 = vrot.slane %v246, 2
      %v248 = vadd.f32 %v246, %v247
      %v249 = vrot.slane %v248, 1
      %v250 = vadd.f32 %v248, %v249
      %v251 = vld [vmem:[%s2] sm:$0x1]
      %v252 = vadd.f32 %v250, %v251
      %v253 = vmax.f32 %v252, 0.0
      %v254 = vld [vmem:[%s3] sm:$0xff]
      %v255 = vld [vmem:[%s3 + $0x8] sm:$0xff]
      %v256 = vperm.slane %v253, 0
      %v257 = vmul.f32 %v254, %v256
      %v258 = vmul.f32 %v255, %v256
      %v259 = vsel %vm241, %v257, 0.0
      %260 = vadd.xlane.f32.xlu0 %v259
      %v261 = vpop.xlane.xlu0 %260
      %v262 = vsel %vm241, %v258, 0.0
      %263 = vadd.xlane.f32.xlu0 %v262
      %v264 = vpop.xlane.xlu0 %263
      %v265 = vld [vmem:[%s4] sm:$0xff]
      %v266 = vld [vmem:[%s4 + $0x8] sm:$0xff]
      %v267 = vadd.f32 %v261, %v265
      %v268 = vadd.f32 %v264, %v266
      %v269 = vsub.f32 0.0, %v267
      %v270 = vsub.f32 0.0, %v268
      %v271 = vmul.f32 %v269, 1.442695
      %v272 = vpow.pop %v271
      %v273 = vmul.f32 %v270, 1.442695
      %v274 = vpow.pop %v273
      %v275 = vadd.f32 %v272, 1.0
      %v276 = vadd.f32 %v274, 1.0
      %v277 = vrcp.pop %v275
      %v278 = vmul.f32 %v275, %v277
      %v279 = vsub.f32 1.0, %v278
      %v280 = vmul.f32 %v277, %v279
      %v281 = vadd.f32 %v277, %v280
      %vm282 = vweird.f32 %v275
      %vm283 = vweird.f32 %v277
      %vm284 = vmor %vm282, %vm283
      %v285 = vsel %vm284, %v277, %v281
      %v286 = vand.u32 2147483647, %v275
      %vm287 = vcmp.eq.f32.partialorder %v286, 8.507059e+37
      %v288 = vand.u32 %v275, 2147483648
      %v289 = vor.u32 1.1754944e-38, %v288
      %v290 = vsel %vm287, %v289, %v285
      %v291 = vmul.f32 1.0, %v290
      %v292 = vrcp.pop %v276
      %v293 = vmul.f32 %v276, %v292
      %v294 = vsub.f32 1.0, %v293
      %v295 = vmul.f32 %v292, %v294
      %v296 = vadd.f32 %v292, %v295
      %vm297 = vweird.f32 %v276
      %vm298 = vweird.f32 %v292
      %vm299 = vmor %vm297, %vm298
      %v300 = vsel %vm299, %v292, %v296
      %v301 = vand.u32 2147483647, %v276
      %vm302 = vcmp.eq.f32.partialorder %v301, 8.507059e+37
      %v303 = vand.u32 %v276, 2147483648
      %v304 = vor.u32 1.1754944e-38, %v303
      %v305 = vsel %vm302, %v304, %v300
      %v306 = vmul.f32 1.0, %v305
      %308 = vset.pattern.permute.xlu0 0
      %309 = vperm.xlu0 %308, %v291
      %v310 = vpop.permute.xlu0 %309
      %313 = vset.pattern.permute.xlu0 0
      %314 = vperm.xlu0 %313, %v306
      %v315 = vpop.permute.xlu0 %314
      %v317 = vmul.f32 %v225, %v310
      %v318 = vmul.f32 %v226, %v310
      %v319 = vmul.f32 %v227, %v315
      %v320 = vmul.f32 %v228, %v315
      %321 = vst [vmem:[%s224] sm:$0xff] %v317
      %322 = vst [vmem:[%s224 + $0x8] sm:$0xff] %v318
      %323 = vst [vmem:[%s224 + $0x10] sm:$0xff] %v319
      %324 = vst [vmem:[%s224 + $0x18] sm:$0xff] %v320
      %p325 = scmp.lt.s32.totalorder %s16, 1
      %s326 = scalar_select %p325, %s16, 1
      %s327 = smul.addr %s326, 4
      %s328 = smul.addr %s327, 8
      %s329 = scalar_lea.vmem %s5, %s328
      // Predicated region
      $region41: #{se_forward.1} parent=39 // pred_check
        %p330 = pneg %p144
      $region42: #{se_forward.1} parent=39 // pred_check_branch
        %332 = sbr.rel (%p330) target = $region44
      $region43: #{se_forward.1} parent=39 // pred_region
        _
      $region44: #{se_forward.1} parent=39 // pred_fallthru
        _
    $region40: #{se_forward.1} parent=5 // pred_fallthru
      _
    %p333 = scmp.le.s32.totalorder 2, %s11
    // Predicated region
    $region45: #{se_forward.1} parent=5 // pred_check
      %p334 = pneg %p333
    $region46: #{se_forward.1} parent=5 // pred_check_branch
      %336 = sbr.rel (%p334) target = $region48
    $region47: #{se_forward.1} parent=5 // pred_region
      %s337 = ssub.s32 %s11, 2
      // Predicated region
      $region49: #{se_forward.1} parent=47 // pred_check
        %p338 = pneg %p150
      $region50: #{se_forward.1} parent=47 // pred_check_branch
        %340 = sbr.rel (%p338) target = $region52
      $region51: #{se_forward.1} parent=47 // pred_region
        %p341 = scmp.lt.s32.totalorder %s17, 1
        %s342 = scalar_select %p341, %s17, 1
        %s343 = smul.addr %s342, 4
        %s344 = smul.addr %s343, 8
        %s345 = scalar_lea.vmem %s5, %s344
      $region52: #{se_forward.1} parent=47 // pred_fallthru
        _
    $region48: #{se_forward.1} parent=5 // pred_fallthru
      _
  $region6: #{se_forward.1} parent=0 // loop_footer
    %s15 = sadd.s32 1, %s11
  $region7: #{se_forward.1} parent=0 // loop_footer_branch
    %10 = sbr.rel target = $region3
  $region8: #{se_forward.1} parent=0 // loop_exit
    _

</llo_original>
